<compile_context>
chip_gen: v5e
topology: v5e:2x2
jax: 0.10.0
libtpu: 0.0.40
codegen_flags: <defaults>
</compile_context>

<pallas_src>
import jax
import jax.numpy as jnp
from jax.experimental import pallas as pl
from jax.experimental.pallas import tpu as pltpu

SUBLANE = 8  # f32 sublane height


def _round_up(x, m):
    return ((x + m - 1) // m) * m


def _pick_bm(M):
    """Row-tile size: <=1024 rows, multiple of 8, >=2 grid steps for large M."""
    if M >= 1024:
        half = _round_up(-(-M // 2), SUBLANE)   # ceil(M/2) rounded to sublane
        return min(1024, half)
    return _round_up(max(M, 1), SUBLANE)


# --------------------------------------------------------------------------
# Pallas kernel: fused Linear + folded-BN (bias-only epilogue)
# --------------------------------------------------------------------------
def _linear_bn_kernel(x_ref, w_ref, b_ref, o_ref):
    # x_ref: (BM, K) f32 (cast to bf16 here, hidden under the DMA),
    # w_ref: (K, 2) bf16 with BN scale pre-folded,
    # b_ref: (1, 2) f32 folded bias, o_ref: (BM, 2) f32.
    x = x_ref[...].astype(jnp.bfloat16)
    acc = jnp.dot(x, w_ref[...], preferred_element_type=jnp.float32)
    o_ref[...] = (acc + b_ref[...]).astype(o_ref.dtype)


# --------------------------------------------------------------------------
# Wrapper
# --------------------------------------------------------------------------
@jax.jit
def predictor_forward(x, params):
    """x: (N, 2048) float32 -> (N, 2) float32.  Linear(2048,2) + BatchNorm1d(2)."""
    w = params["fc1_w"]          # (2, 2048)  PyTorch (out, in) layout
    b_fc = params["fc1_b"]       # (2,)
    gamma = params["bn_gamma"]   # (2,)
    beta = params["bn_beta"]     # (2,)
    mean = params["bn_mean"]     # (2,)
    var = params["bn_var"]       # (2,)
    eps = 1e-5

    # Fold BN (running stats) into the linear weight / bias.
    s = gamma * jax.lax.rsqrt(var + eps)                    # (2,)
    w_folded = (w.T * s[None, :]).astype(jnp.bfloat16)      # (2048, 2) bf16
    bias_folded = (b_fc * s + (beta - mean * s)).astype(jnp.float32).reshape(1, -1)

    x = x.astype(jnp.float32)                               # original dtype stream
    M, K = x.shape
    N = w_folded.shape[1]                                   # 2
    BM = _pick_bm(M)

    out = pl.pallas_call(
        _linear_bn_kernel,
        out_shape=jax.ShapeDtypeStruct((M, N), jnp.float32),
        grid=(pl.cdiv(M, BM),),
        in_specs=[
            pl.BlockSpec((BM, K), lambda i: (i, 0)),   # f32 activations, tiled over M
            pl.BlockSpec((K, N), lambda i: (0, 0)),    # full folded weight panel
            pl.BlockSpec((1, N), lambda i: (0, 0)),    # folded bias row
        ],
        out_specs=pl.BlockSpec((BM, N), lambda i: (i, 0)),
        compiler_params=pltpu.CompilerParams(
            dimension_semantics=("parallel",),
            vmem_limit_bytes=32 << 20,                 # safe on v5e/v6e/v7x for BM<=1024
        ),
    )(x, w_folded, bias_folded)
    return out


# --------------------------------------------------------------------------
# Deterministic synthetic Predictor parameters
# --------------------------------------------------------------------------
def init_predictor_params(key, in_features=2048, out_features=2):
    k1, k2, k3, k4 = jax.random.split(key, 4)
    std = (2.0 / in_features) ** 0.5
    return {
        "fc1_w": std * jax.random.normal(k1, (out_features, in_features), jnp.float32),
        "fc1_b": 0.01 * jax.random.normal(k2, (out_features,), jnp.float32),
        "bn_gamma": 1.0 + 0.05 * jax.random.normal(k3, (out_features,), jnp.float32),
        "bn_beta": 0.05 * jax.random.normal(k4, (out_features,), jnp.float32),
        "bn_mean": jnp.zeros((out_features,), jnp.float32),
        "bn_var": jnp.ones((out_features,), jnp.float32),
    }


def _reference_forward(x, params, eps=1e-5):
    z = x @ params["fc1_w"].T + params["fc1_b"]
    s = params["bn_gamma"] / jnp.sqrt(params["bn_var"] + eps)
    return (z - params["bn_mean"]) * s + params["bn_beta"]


if __name__ == "__main__":
    key = jax.random.PRNGKey(0)
    kp, kx = jax.random.split(key)
    params = init_predictor_params(kp)
    x = jax.random.normal(kx, (2, 2048), jnp.float32)   # Predictor input: (N, 2048)

    out = predictor_forward(x, params)
    out = jax.block_until_ready(out)

    assert out.shape == (2, 2), out.shape
    assert bool(jnp.all(jnp.isfinite(out)))
    ref = _reference_forward(x, params)
    assert bool(jnp.allclose(out, ref, atol=3e-2, rtol=1e-2)), (out, ref)
    print("KERNEL_OK")
</pallas_src>

<mosaic_0001>
module attributes {stable_mosaic.version = 11 : i64} {
  func.func @_linear_bn_kernel(%arg0: i32, %arg1: memref<8x2048xf32, #tpu.memory_space<vmem>>, %arg2: memref<2048x2xbf16, #tpu.memory_space<vmem>>, %arg3: memref<1x2xf32, #tpu.memory_space<vmem>>, %arg4: memref<8x2xf32, #tpu.memory_space<vmem>>) attributes {dimension_semantics = [#tpu.dimension_semantics<parallel>], iteration_bounds = array<i64: 1>, scalar_prefetch = 0 : i64, scratch_operands = 0 : i64, tpu.core_type = #tpu.core_type<tc>, window_params = [{transform_indices = @transform_0, window_bounds = array<i64: 8, 2048>}, {pipeline_mode = #tpu.pipeline_mode<synchronous>, transform_indices = @transform_1, window_bounds = array<i64: 2048, 2>}, {pipeline_mode = #tpu.pipeline_mode<synchronous>, transform_indices = @transform_2, window_bounds = array<i64: 1, 2>}, {transform_indices = @transform_3, window_bounds = array<i64: 8, 2>}]} {
    %c0 = arith.constant 0 : index
    %c0_0 = arith.constant 0 : index
    %0 = vector.load %arg1[%c0, %c0_0] : memref<8x2048xf32, #tpu.memory_space<vmem>>, vector<8x2048xf32>
    %1 = arith.truncf %0 : vector<8x2048xf32> to vector<8x2048xbf16>
    %c0_1 = arith.constant 0 : index
    %c0_2 = arith.constant 0 : index
    %2 = vector.load %arg2[%c0_1, %c0_2] : memref<2048x2xbf16, #tpu.memory_space<vmem>>, vector<2048x2xbf16>
    %cst = arith.constant dense<0.000000e+00> : vector<8x2xf32>
    %3 = tpu.matmul %1, %2, %cst {dimension_numbers = #tpu.dot_dimension_numbers<[1], [0], [0], [1], [0, 0, 1, 1], [], []>} : vector<8x2048xbf16>, vector<2048x2xbf16>, vector<8x2xf32> -> vector<8x2xf32>
    %c0_3 = arith.constant 0 : index
    %c0_4 = arith.constant 0 : index
    %4 = vector.load %arg3[%c0_3, %c0_4] : memref<1x2xf32, #tpu.memory_space<vmem>>, vector<1x2xf32>
    %5 = vector.broadcast %4 : vector<1x2xf32> to vector<8x2xf32>
    %6 = arith.addf %3, %5 : vector<8x2xf32>
    %c0_5 = arith.constant 0 : index
    %c0_6 = arith.constant 0 : index
    %7 = vector.load %arg4[%c0_5, %c0_6] : memref<8x2xf32, #tpu.memory_space<vmem>>, vector<8x2xf32>
    tpu.vector_store %arg4[%c0_5, %c0_6], %6 {strides = array<i32>} : memref<8x2xf32, #tpu.memory_space<vmem>>, vector<8x2xf32>,
    return
  }
  func.func @transform_0(%arg0: i32) -> (i32, i32) {
    %c0_i32 = arith.constant 0 : i32
    %c0_i32_0 = arith.constant 0 : i32
    return %arg0, %c0_i32 : i32, i32
  }
  func.func @transform_1(%arg0: i32) -> (i32, i32) {
    %c0_i32 = arith.constant 0 : i32
    %c0_i32_0 = arith.constant 0 : i32
    %c0_i32_1 = arith.constant 0 : i32
    return %c0_i32, %c0_i32_0 : i32, i32
  }
  func.func @transform_2(%arg0: i32) -> (i32, i32) {
    %c0_i32 = arith.constant 0 : i32
    %c0_i32_0 = arith.constant 0 : i32
    %c0_i32_1 = arith.constant 0 : i32
    return %c0_i32, %c0_i32_0 : i32, i32
  }
  func.func @transform_3(%arg0: i32) -> (i32, i32) {
    %c0_i32 = arith.constant 0 : i32
    %c0_i32_0 = arith.constant 0 : i32
    return %arg0, %c0_i32 : i32, i32
  }
}

</mosaic_0001>

<llo_original>
// kernel: predictor_forward.1
$region0: #{predictor_forward.1}
  #allocation0 [shape = 'u32[]', space=smem, size = 0x4, offset = 0x4, fixed_abs, tag = 'smem constant byte address 0x4 - core index']
  #allocation1 [shape = 'u32[72,128]{1,0:T(1,128)}', space=vmem, size = 0x9000, scoped, tag = 'internal scratch']
  %s0 = inlined_call_operand.vmem [shape: f32[2,2048], index: 0, kind: input, shape index: {}]
  %s1 = inlined_call_operand.vmem [shape: bf16[2048,2], index: 1, kind: input, shape index: {}]
  %s2 = inlined_call_operand.vmem [shape: f32[1,2], index: 2, kind: input, shape index: {}]
  %s3 = inlined_call_operand.hbm [shape: f32[2,2], index: 3, kind: output, shape index: {}]
  %s4 = sld [smem:[#allocation0]]
  $region22: #{predictor_forward.1} parent=0
    _
  %s6 = ssub.s32 1, %s4
  %s7 = scalar_select 0, %s6, %s4
  $region1: #{predictor_forward.1} parent=0
    #allocation2 [shape = 'u8[4096]{0}', space=vmem, size = 0x1000, scoped, tag = 'output window, operand 0, single buffered']
    #allocation3 [shape = 's32[1]{0}', space=sflag, size = 0x4, scoped, tag = 'scoped memory for predictor_forward.1']
    %8 = vsyncpa [#allocation3], 0
    // Predicated region
    $region2: #{predictor_forward.1} parent=1 // pred_check
      _
    $region3: #{predictor_forward.1} parent=1 // pred_check_branch
      %10 = sbr.rel (0) target = $region5
    $region4: #{predictor_forward.1} parent=1 // pred_region
      _
    $region5: #{predictor_forward.1} parent=1 // pred_fallthru
      _
    // Predicated region
    $region6: #{predictor_forward.1} parent=1 // pred_check
      _
    $region7: #{predictor_forward.1} parent=1 // pred_check_branch
      %12 = sbr.rel (0) target = $region9
    $region8: #{predictor_forward.1} parent=1 // pred_region
      _
    $region9: #{predictor_forward.1} parent=1 // pred_fallthru
      _
    // Predicated region
    $region10: #{predictor_forward.1} parent=1 // pred_check
      _
    $region11: #{predictor_forward.1} parent=1 // pred_check_branch
      %14 = sbr.rel (0) target = $region13
    $region12: #{predictor_forward.1} parent=1 // pred_region
      _
    $region13: #{predictor_forward.1} parent=1 // pred_fallthru
      _
    %v15 = vld [vmem:[%s0] sm:$0xff]
    %v16 = vld [vmem:[%s0 + $0x8] sm:$0xff]
    %v17 = vld [vmem:[%s0 + $0x10] sm:$0xff]
    %v18 = vld [vmem:[%s0 + $0x18] sm:$0xff]
    %v19 = vld [vmem:[%s0 + $0x20] sm:$0xff]
    %v20 = vld [vmem:[%s0 + $0x28] sm:$0xff]
    %v21 = vld [vmem:[%s0 + $0x30] sm:$0xff]
    %v22 = vld [vmem:[%s0 + $0x38] sm:$0xff]
    %v23 = vld [vmem:[%s0 + $0x40] sm:$0xff]
    %v24 = vld [vmem:[%s0 + $0x48] sm:$0xff]
    %v25 = vld [vmem:[%s0 + $0x50] sm:$0xff]
    %v26 = vld [vmem:[%s0 + $0x58] sm:$0xff]
    %v27 = vld [vmem:[%s0 + $0x60] sm:$0xff]
    %v28 = vld [vmem:[%s0 + $0x68] sm:$0xff]
    %v29 = vld [vmem:[%s0 + $0x70] sm:$0xff]
    %v30 = vld [vmem:[%s0 + $0x78] sm:$0xff]
    %47 = vst [vmem:[#allocation1] ss:$4 sm:$0xff] %v15
    %s48 = scalar_lea.vmem [#allocation1], 1
    %49 = vst [vmem:[%s48] ss:$4 sm:$0xff] %v19
    %s50 = scalar_lea.vmem [#allocation1], 2
    %51 = vst [vmem:[%s50] ss:$4 sm:$0xff] %v23
    %s52 = scalar_lea.vmem [#allocation1], 3
    %53 = vst [vmem:[%s52] ss:$4 sm:$0xff] %v27
    %s54 = scalar_lea.vmem [#allocation1], 32
    %55 = vst [vmem:[%s54] ss:$4 sm:$0xff] %v16
    %s56 = scalar_lea.vmem [#allocation1], 33
    %57 = vst [vmem:[%s56] ss:$4 sm:$0xff] %v20
    %s58 = scalar_lea.vmem [#allocation1], 34
    %59 = vst [vmem:[%s58] ss:$4 sm:$0xff] %v24
    %s60 = scalar_lea.vmem [#allocation1], 35
    %61 = vst [vmem:[%s60] ss:$4 sm:$0xff] %v28
    %v62 = vld.sshfl [vmem:[#allocation1] sm:$0xff pattern:$0x73625140]
    %v63 = vld.sshfl [vmem:[#allocation1 + $0x8] sm:$0xff pattern:$0x73625140]
    %v64 = vld.sshfl [vmem:[#allocation1 + $0x10] sm:$0xff pattern:$0x73625140]
    %v65 = vld.sshfl [vmem:[#allocation1 + $0x18] sm:$0xff pattern:$0x73625140]
    %v66 = vld.sshfl [vmem:[#allocation1 + $0x20] sm:$0xff pattern:$0x73625140]
    %v67 = vld.sshfl [vmem:[#allocation1 + $0x28] sm:$0xff pattern:$0x73625140]
    %v68 = vld.sshfl [vmem:[#allocation1 + $0x30] sm:$0xff pattern:$0x73625140]
    %v69 = vld.sshfl [vmem:[#allocation1 + $0x38] sm:$0xff pattern:$0x73625140]
    %70 = vst [vmem:[#allocation1] ss:$4 sm:$0xff] %v17
    %71 = vst [vmem:[%s48] ss:$4 sm:$0xff] %v21
    %72 = vst [vmem:[%s50] ss:$4 sm:$0xff] %v25
    %73 = vst [vmem:[%s52] ss:$4 sm:$0xff] %v29
    %74 = vst [vmem:[%s54] ss:$4 sm:$0xff] %v18
    %75 = vst [vmem:[%s56] ss:$4 sm:$0xff] %v22
    %76 = vst [vmem:[%s58] ss:$4 sm:$0xff] %v26
    %77 = vst [vmem:[%s60] ss:$4 sm:$0xff] %v30
    %v78 = vld.sshfl [vmem:[#allocation1] sm:$0xff pattern:$0x73625140]
    %v79 = vld.sshfl [vmem:[#allocation1 + $0x8] sm:$0xff pattern:$0x73625140]
    %v80 = vld.sshfl [vmem:[#allocation1 + $0x10] sm:$0xff pattern:$0x73625140]
    %v81 = vld.sshfl [vmem:[#allocation1 + $0x18] sm:$0xff pattern:$0x73625140]
    %v82 = vld.sshfl [vmem:[#allocation1 + $0x20] sm:$0xff pattern:$0x73625140]
    %v83 = vld.sshfl [vmem:[#allocation1 + $0x28] sm:$0xff pattern:$0x73625140]
    %v84 = vld.sshfl [vmem:[#allocation1 + $0x30] sm:$0xff pattern:$0x73625140]
    %v85 = vld.sshfl [vmem:[#allocation1 + $0x38] sm:$0xff pattern:$0x73625140]
    %v102 = vpack.c.bf16 %v62, %v62
    %v103 = vpack.c.bf16 %v63, %v63
    %v104 = vpack.c.bf16 %v64, %v64
    %v105 = vpack.c.bf16 %v65, %v65
    %v106 = vpack.c.bf16 %v66, %v66
    %v107 = vpack.c.bf16 %v67, %v67
    %v108 = vpack.c.bf16 %v68, %v68
    %v109 = vpack.c.bf16 %v69, %v69
    %v110 = vpack.c.bf16 %v78, %v78
    %v111 = vpack.c.bf16 %v79, %v79
    %v112 = vpack.c.bf16 %v80, %v80
    %v113 = vpack.c.bf16 %v81, %v81
    %v114 = vpack.c.bf16 %v82, %v82
    %v115 = vpack.c.bf16 %v83, %v83
    %v116 = vpack.c.bf16 %v84, %v84
    %v117 = vpack.c.bf16 %v85, %v85
    %v118 = vld [vmem:[%s1] sm:$0xf]
    %v119 = vld [vmem:[%s1 + $0x4] sm:$0xf]
    %v120 = vld [vmem:[%s1 + $0x8] sm:$0xf]
    %v121 = vld [vmem:[%s1 + $0xc] sm:$0xf]
    %v122 = vld [vmem:[%s1 + $0x10] sm:$0xf]
    %v123 = vld [vmem:[%s1 + $0x14] sm:$0xf]
    %v124 = vld [vmem:[%s1 + $0x18] sm:$0xf]
    %v125 = vld [vmem:[%s1 + $0x1c] sm:$0xf]
    %v126 = vld [vmem:[%s1 + $0x20] sm:$0xf]
    %v127 = vld [vmem:[%s1 + $0x24] sm:$0xf]
    %v128 = vld [vmem:[%s1 + $0x28] sm:$0xf]
    %v129 = vld [vmem:[%s1 + $0x2c] sm:$0xf]
    %v130 = vld [vmem:[%s1 + $0x30] sm:$0xf]
    %v131 = vld [vmem:[%s1 + $0x34] sm:$0xf]
    %v132 = vld [vmem:[%s1 + $0x38] sm:$0xf]
    %v133 = vld [vmem:[%s1 + $0x3c] sm:$0xf]
    %v134 = vld [vmem:[%s1 + $0x40] sm:$0xf]
    %v135 = vld [vmem:[%s1 + $0x44] sm:$0xf]
    %v136 = vld [vmem:[%s1 + $0x48] sm:$0xf]
    %v137 = vld [vmem:[%s1 + $0x4c] sm:$0xf]
    %v138 = vld [vmem:[%s1 + $0x50] sm:$0xf]
    %v139 = vld [vmem:[%s1 + $0x54] sm:$0xf]
    %v140 = vld [vmem:[%s1 + $0x58] sm:$0xf]
    %v141 = vld [vmem:[%s1 + $0x5c] sm:$0xf]
    %v142 = vld [vmem:[%s1 + $0x60] sm:$0xf]
    %v143 = vld [vmem:[%s1 + $0x64] sm:$0xf]
    %v144 = vld [vmem:[%s1 + $0x68] sm:$0xf]
    %v145 = vld [vmem:[%s1 + $0x6c] sm:$0xf]
    %v146 = vld [vmem:[%s1 + $0x70] sm:$0xf]
    %v147 = vld [vmem:[%s1 + $0x74] sm:$0xf]
    %v148 = vld [vmem:[%s1 + $0x78] sm:$0xf]
    %v149 = vld [vmem:[%s1 + $0x7c] sm:$0xf]
    %v150 = vld [vmem:[%s1 + $0x80] sm:$0xf]
    %v151 = vld [vmem:[%s1 + $0x84] sm:$0xf]
    %v152 = vld [vmem:[%s1 + $0x88] sm:$0xf]
    %v153 = vld [vmem:[%s1 + $0x8c] sm:$0xf]
    %v154 = vld [vmem:[%s1 + $0x90] sm:$0xf]
    %v155 = vld [vmem:[%s1 + $0x94] sm:$0xf]
    %v156 = vld [vmem:[%s1 + $0x98] sm:$0xf]
    %v157 = vld [vmem:[%s1 + $0x9c] sm:$0xf]
    %v158 = vld [vmem:[%s1 + $0xa0] sm:$0xf]
    %v159 = vld [vmem:[%s1 + $0xa4] sm:$0xf]
    %v160 = vld [vmem:[%s1 + $0xa8] sm:$0xf]
    %v161 = vld [vmem:[%s1 + $0xac] sm:$0xf]
    %v162 = vld [vmem:[%s1 + $0xb0] sm:$0xf]
    %v163 = vld [vmem:[%s1 + $0xb4] sm:$0xf]
    %v164 = vld [vmem:[%s1 + $0xb8] sm:$0xf]
    %v165 = vld [vmem:[%s1 + $0xbc] sm:$0xf]
    %v166 = vld [vmem:[%s1 + $0xc0] sm:$0xf]
    %v167 = vld [vmem:[%s1 + $0xc4] sm:$0xf]
    %v168 = vld [vmem:[%s1 + $0xc8] sm:$0xf]
    %v169 = vld [vmem:[%s1 + $0xcc] sm:$0xf]
    %v170 = vld [vmem:[%s1 + $0xd0] sm:$0xf]
    %v171 = vld [vmem:[%s1 + $0xd4] sm:$0xf]
    %v172 = vld [vmem:[%s1 + $0xd8] sm:$0xf]
    %v173 = vld [vmem:[%s1 + $0xdc] sm:$0xf]
    %v174 = vld [vmem:[%s1 + $0xe0] sm:$0xf]
    %v175 = vld [vmem:[%s1 + $0xe4] sm:$0xf]
    %v176 = vld [vmem:[%s1 + $0xe8] sm:$0xf]
    %v177 = vld [vmem:[%s1 + $0xec] sm:$0xf]
    %v178 = vld [vmem:[%s1 + $0xf0] sm:$0xf]
    %v179 = vld [vmem:[%s1 + $0xf4] sm:$0xf]
    %v180 = vld [vmem:[%s1 + $0xf8] sm:$0xf]
    %v181 = vld [vmem:[%s1 + $0xfc] sm:$0xf]
    %v182 = vld [vmem:[%s1 + $0x100] sm:$0xf]
    %v183 = vld [vmem:[%s1 + $0x104] sm:$0xf]
    %v184 = vld [vmem:[%s1 + $0x108] sm:$0xf]
    %v185 = vld [vmem:[%s1 + $0x10c] sm:$0xf]
    %v186 = vld [vmem:[%s1 + $0x110] sm:$0xf]
    %v187 = vld [vmem:[%s1 + $0x114] sm:$0xf]
    %v188 = vld [vmem:[%s1 + $0x118] sm:$0xf]
    %v189 = vld [vmem:[%s1 + $0x11c] sm:$0xf]
    %v190 = vld [vmem:[%s1 + $0x120] sm:$0xf]
    %v191 = vld [vmem:[%s1 + $0x124] sm:$0xf]
    %v192 = vld [vmem:[%s1 + $0x128] sm:$0xf]
    %v193 = vld [vmem:[%s1 + $0x12c] sm:$0xf]
    %v194 = vld [vmem:[%s1 + $0x130] sm:$0xf]
    %v195 = vld [vmem:[%s1 + $0x134] sm:$0xf]
    %v196 = vld [vmem:[%s1 + $0x138] sm:$0xf]
    %v197 = vld [vmem:[%s1 + $0x13c] sm:$0xf]
    %v198 = vld [vmem:[%s1 + $0x140] sm:$0xf]
    %v199 = vld [vmem:[%s1 + $0x144] sm:$0xf]
    %v200 = vld [vmem:[%s1 + $0x148] sm:$0xf]
    %v201 = vld [vmem:[%s1 + $0x14c] sm:$0xf]
    %v202 = vld [vmem:[%s1 + $0x150] sm:$0xf]
    %v203 = vld [vmem:[%s1 + $0x154] sm:$0xf]
    %v204 = vld [vmem:[%s1 + $0x158] sm:$0xf]
    %v205 = vld [vmem:[%s1 + $0x15c] sm:$0xf]
    %v206 = vld [vmem:[%s1 + $0x160] sm:$0xf]
    %v207 = vld [vmem:[%s1 + $0x164] sm:$0xf]
    %v208 = vld [vmem:[%s1 + $0x168] sm:$0xf]
    %v209 = vld [vmem:[%s1 + $0x16c] sm:$0xf]
    %v210 = vld [vmem:[%s1 + $0x170] sm:$0xf]
    %v211 = vld [vmem:[%s1 + $0x174] sm:$0xf]
    %v212 = vld [vmem:[%s1 + $0x178] sm:$0xf]
    %v213 = vld [vmem:[%s1 + $0x17c] sm:$0xf]
    %v214 = vld [vmem:[%s1 + $0x180] sm:$0xf]
    %v215 = vld [vmem:[%s1 + $0x184] sm:$0xf]
    %v216 = vld [vmem:[%s1 + $0x188] sm:$0xf]
    %v217 = vld [vmem:[%s1 + $0x18c] sm:$0xf]
    %v218 = vld [vmem:[%s1 + $0x190] sm:$0xf]
    %v219 = vld [vmem:[%s1 + $0x194] sm:$0xf]
    %v220 = vld [vmem:[%s1 + $0x198] sm:$0xf]
    %v221 = vld [vmem:[%s1 + $0x19c] sm:$0xf]
    %v222 = vld [vmem:[%s1 + $0x1a0] sm:$0xf]
    %v223 = vld [vmem:[%s1 + $0x1a4] sm:$0xf]
    %v224 = vld [vmem:[%s1 + $0x1a8] sm:$0xf]
    %v225 = vld [vmem:[%s1 + $0x1ac] sm:$0xf]
    %v226 = vld [vmem:[%s1 + $0x1b0] sm:$0xf]
    %v227 = vld [vmem:[%s1 + $0x1b4] sm:$0xf]
    %v228 = vld [vmem:[%s1 + $0x1b8] sm:$0xf]
    %v229 = vld [vmem:[%s1 + $0x1bc] sm:$0xf]
    %v230 = vld [vmem:[%s1 + $0x1c0] sm:$0xf]
    %v231 = vld [vmem:[%s1 + $0x1c4] sm:$0xf]
    %v232 = vld [vmem:[%s1 + $0x1c8] sm:$0xf]
    %v233 = vld [vmem:[%s1 + $0x1cc] sm:$0xf]
    %v234 = vld [vmem:[%s1 + $0x1d0] sm:$0xf]
    %v235 = vld [vmem:[%s1 + $0x1d4] sm:$0xf]
    %v236 = vld [vmem:[%s1 + $0x1d8] sm:$0xf]
    %v237 = vld [vmem:[%s1 + $0x1dc] sm:$0xf]
    %v238 = vld [vmem:[%s1 + $0x1e0] sm:$0xf]
    %v239 = vld [vmem:[%s1 + $0x1e4] sm:$0xf]
    %v240 = vld [vmem:[%s1 + $0x1e8] sm:$0xf]
    %v241 = vld [vmem:[%s1 + $0x1ec] sm:$0xf]
    %v242 = vld [vmem:[%s1 + $0x1f0] sm:$0xf]
    %v243 = vld [vmem:[%s1 + $0x1f4] sm:$0xf]
    %v244 = vld [vmem:[%s1 + $0x1f8] sm:$0xf]
    %v245 = vld [vmem:[%s1 + $0x1fc] sm:$0xf]
    %v246 = vld [vmem:[%s1 + $0x200] sm:$0xf]
    %v247 = vld [vmem:[%s1 + $0x204] sm:$0xf]
    %v248 = vld [vmem:[%s1 + $0x208] sm:$0xf]
    %v249 = vld [vmem:[%s1 + $0x20c] sm:$0xf]
    %v250 = vld [vmem:[%s1 + $0x210] sm:$0xf]
    %v251 = vld [vmem:[%s1 + $0x214] sm:$0xf]
    %v252 = vld [vmem:[%s1 + $0x218] sm:$0xf]
    %v253 = vld [vmem:[%s1 + $0x21c] sm:$0xf]
    %v254 = vld [vmem:[%s1 + $0x220] sm:$0xf]
    %v255 = vld [vmem:[%s1 + $0x224] sm:$0xf]
    %v256 = vld [vmem:[%s1 + $0x228] sm:$0xf]
    %v257 = vld [vmem:[%s1 + $0x22c] sm:$0xf]
    %v258 = vld [vmem:[%s1 + $0x230] sm:$0xf]
    %v259 = vld [vmem:[%s1 + $0x234] sm:$0xf]
    %v260 = vld [vmem:[%s1 + $0x238] sm:$0xf]
    %v261 = vld [vmem:[%s1 + $0x23c] sm:$0xf]
    %v262 = vld [vmem:[%s1 + $0x240] sm:$0xf]
    %v263 = vld [vmem:[%s1 + $0x244] sm:$0xf]
    %v264 = vld [vmem:[%s1 + $0x248] sm:$0xf]
    %v265 = vld [vmem:[%s1 + $0x24c] sm:$0xf]
    %v266 = vld [vmem:[%s1 + $0x250] sm:$0xf]
    %v267 = vld [vmem:[%s1 + $0x254] sm:$0xf]
    %v268 = vld [vmem:[%s1 + $0x258] sm:$0xf]
    %v269 = vld [vmem:[%s1 + $0x25c] sm:$0xf]
    %v270 = vld [vmem:[%s1 + $0x260] sm:$0xf]
    %v271 = vld [vmem:[%s1 + $0x264] sm:$0xf]
    %v272 = vld [vmem:[%s1 + $0x268] sm:$0xf]
    %v273 = vld [vmem:[%s1 + $0x26c] sm:$0xf]
    %v274 = vld [vmem:[%s1 + $0x270] sm:$0xf]
    %v275 = vld [vmem:[%s1 + $0x274] sm:$0xf]
    %v276 = vld [vmem:[%s1 + $0x278] sm:$0xf]
    %v277 = vld [vmem:[%s1 + $0x27c] sm:$0xf]
    %v278 = vld [vmem:[%s1 + $0x280] sm:$0xf]
    %v279 = vld [vmem:[%s1 + $0x284] sm:$0xf]
    %v280 = vld [vmem:[%s1 + $0x288] sm:$0xf]
    %v281 = vld [vmem:[%s1 + $0x28c] sm:$0xf]
    %v282 = vld [vmem:[%s1 + $0x290] sm:$0xf]
    %v283 = vld [vmem:[%s1 + $0x294] sm:$0xf]
    %v284 = vld [vmem:[%s1 + $0x298] sm:$0xf]
    %v285 = vld [vmem:[%s1 + $0x29c] sm:$0xf]
    %v286 = vld [vmem:[%s1 + $0x2a0] sm:$0xf]
    %v287 = vld [vmem:[%s1 + $0x2a4] sm:$0xf]
    %v288 = vld [vmem:[%s1 + $0x2a8] sm:$0xf]
    %v289 = vld [vmem:[%s1 + $0x2ac] sm:$0xf]
    %v290 = vld [vmem:[%s1 + $0x2b0] sm:$0xf]
    %v291 = vld [vmem:[%s1 + $0x2b4] sm:$0xf]
    %v292 = vld [vmem:[%s1 + $0x2b8] sm:$0xf]
    %v293 = vld [vmem:[%s1 + $0x2bc] sm:$0xf]
    %v294 = vld [vmem:[%s1 + $0x2c0] sm:$0xf]
    %v295 = vld [vmem:[%s1 + $0x2c4] sm:$0xf]
    %v296 = vld [vmem:[%s1 + $0x2c8] sm:$0xf]
    %v297 = vld [vmem:[%s1 + $0x2cc] sm:$0xf]
    %v298 = vld [vmem:[%s1 + $0x2d0] sm:$0xf]
    %v299 = vld [vmem:[%s1 + $0x2d4] sm:$0xf]
    %v300 = vld [vmem:[%s1 + $0x2d8] sm:$0xf]
    %v301 = vld [vmem:[%s1 + $0x2dc] sm:$0xf]
    %v302 = vld [vmem:[%s1 + $0x2e0] sm:$0xf]
    %v303 = vld [vmem:[%s1 + $0x2e4] sm:$0xf]
    %v304 = vld [vmem:[%s1 + $0x2e8] sm:$0xf]
    %v305 = vld [vmem:[%s1 + $0x2ec] sm:$0xf]
    %v306 = vld [vmem:[%s1 + $0x2f0] sm:$0xf]
    %v307 = vld [vmem:[%s1 + $0x2f4] sm:$0xf]
    %v308 = vld [vmem:[%s1 + $0x2f8] sm:$0xf]
    %v309 = vld [vmem:[%s1 + $0x2fc] sm:$0xf]
    %v310 = vld [vmem:[%s1 + $0x300] sm:$0xf]
    %v311 = vld [vmem:[%s1 + $0x304] sm:$0xf]
    %v312 = vld [vmem:[%s1 + $0x308] sm:$0xf]
    %v313 = vld [vmem:[%s1 + $0x30c] sm:$0xf]
    %v314 = vld [vmem:[%s1 + $0x310] sm:$0xf]
    %v315 = vld [vmem:[%s1 + $0x314] sm:$0xf]
    %v316 = vld [vmem:[%s1 + $0x318] sm:$0xf]
    %v317 = vld [vmem:[%s1 + $0x31c] sm:$0xf]
    %v318 = vld [vmem:[%s1 + $0x320] sm:$0xf]
    %v319 = vld [vmem:[%s1 + $0x324] sm:$0xf]
    %v320 = vld [vmem:[%s1 + $0x328] sm:$0xf]
    %v321 = vld [vmem:[%s1 + $0x32c] sm:$0xf]
    %v322 = vld [vmem:[%s1 + $0x330] sm:$0xf]
    %v323 = vld [vmem:[%s1 + $0x334] sm:$0xf]
    %v324 = vld [vmem:[%s1 + $0x338] sm:$0xf]
    %v325 = vld [vmem:[%s1 + $0x33c] sm:$0xf]
    %v326 = vld [vmem:[%s1 + $0x340] sm:$0xf]
    %v327 = vld [vmem:[%s1 + $0x344] sm:$0xf]
    %v328 = vld [vmem:[%s1 + $0x348] sm:$0xf]
    %v329 = vld [vmem:[%s1 + $0x34c] sm:$0xf]
    %v330 = vld [vmem:[%s1 + $0x350] sm:$0xf]
    %v331 = vld [vmem:[%s1 + $0x354] sm:$0xf]
    %v332 = vld [vmem:[%s1 + $0x358] sm:$0xf]
    %v333 = vld [vmem:[%s1 + $0x35c] sm:$0xf]
    %v334 = vld [vmem:[%s1 + $0x360] sm:$0xf]
    %v335 = vld [vmem:[%s1 + $0x364] sm:$0xf]
    %v336 = vld [vmem:[%s1 + $0x368] sm:$0xf]
    %v337 = vld [vmem:[%s1 + $0x36c] sm:$0xf]
    %v338 = vld [vmem:[%s1 + $0x370] sm:$0xf]
    %v339 = vld [vmem:[%s1 + $0x374] sm:$0xf]
    %v340 = vld [vmem:[%s1 + $0x378] sm:$0xf]
    %v341 = vld [vmem:[%s1 + $0x37c] sm:$0xf]
    %v342 = vld [vmem:[%s1 + $0x380] sm:$0xf]
    %v343 = vld [vmem:[%s1 + $0x384] sm:$0xf]
    %v344 = vld [vmem:[%s1 + $0x388] sm:$0xf]
    %v345 = vld [vmem:[%s1 + $0x38c] sm:$0xf]
    %v346 = vld [vmem:[%s1 + $0x390] sm:$0xf]
    %v347 = vld [vmem:[%s1 + $0x394] sm:$0xf]
    %v348 = vld [vmem:[%s1 + $0x398] sm:$0xf]
    %v349 = vld [vmem:[%s1 + $0x39c] sm:$0xf]
    %v350 = vld [vmem:[%s1 + $0x3a0] sm:$0xf]
    %v351 = vld [vmem:[%s1 + $0x3a4] sm:$0xf]
    %v352 = vld [vmem:[%s1 + $0x3a8] sm:$0xf]
    %v353 = vld [vmem:[%s1 + $0x3ac] sm:$0xf]
    %v354 = vld [vmem:[%s1 + $0x3b0] sm:$0xf]
    %v355 = vld [vmem:[%s1 + $0x3b4] sm:$0xf]
    %v356 = vld [vmem:[%s1 + $0x3b8] sm:$0xf]
    %v357 = vld [vmem:[%s1 + $0x3bc] sm:$0xf]
    %v358 = vld [vmem:[%s1 + $0x3c0] sm:$0xf]
    %v359 = vld [vmem:[%s1 + $0x3c4] sm:$0xf]
    %v360 = vld [vmem:[%s1 + $0x3c8] sm:$0xf]
    %v361 = vld [vmem:[%s1 + $0x3cc] sm:$0xf]
    %v362 = vld [vmem:[%s1 + $0x3d0] sm:$0xf]
    %v363 = vld [vmem:[%s1 + $0x3d4] sm:$0xf]
    %v364 = vld [vmem:[%s1 + $0x3d8] sm:$0xf]
    %v365 = vld [vmem:[%s1 + $0x3dc] sm:$0xf]
    %v366 = vld [vmem:[%s1 + $0x3e0] sm:$0xf]
    %v367 = vld [vmem:[%s1 + $0x3e4] sm:$0xf]
    %v368 = vld [vmem:[%s1 + $0x3e8] sm:$0xf]
    %v369 = vld [vmem:[%s1 + $0x3ec] sm:$0xf]
    %v370 = vld [vmem:[%s1 + $0x3f0] sm:$0xf]
    %v371 = vld [vmem:[%s1 + $0x3f4] sm:$0xf]
    %v372 = vld [vmem:[%s1 + $0x3f8] sm:$0xf]
    %v373 = vld [vmem:[%s1 + $0x3fc] sm:$0xf]
    %v374 = vld [vmem:[%s2] sm:$0x1]
    %v376 = vperm.slane %v374, 0
    %v634 = vunpack.c.l.b16 %v118
    %v635 = vunpack.c.l.b16 %v119
    %v636 = vunpack.c.l.b16 %v120
    %v637 = vunpack.c.l.b16 %v121
    %v638 = vunpack.c.l.b16 %v122
    %v639 = vunpack.c.l.b16 %v123
    %v640 = vunpack.c.l.b16 %v124
    %v641 = vunpack.c.l.b16 %v125
    %v642 = vunpack.c.l.b16 %v126
    %v643 = vunpack.c.l.b16 %v127
    %v644 = vunpack.c.l.b16 %v128
    %v645 = vunpack.c.l.b16 %v129
    %v646 = vunpack.c.l.b16 %v130
    %v647 = vunpack.c.l.b16 %v131
    %v648 = vunpack.c.l.b16 %v132
    %v649 = vunpack.c.l.b16 %v133
    %v650 = vunpack.c.l.b16 %v134
    %v651 = vunpack.c.l.b16 %v135
    %v652 = vunpack.c.l.b16 %v136
    %v653 = vunpack.c.l.b16 %v137
    %v654 = vunpack.c.l.b16 %v138
    %v655 = vunpack.c.l.b16 %v139
    %v656 = vunpack.c.l.b16 %v140
    %v657 = vunpack.c.l.b16 %v141
    %v658 = vunpack.c.l.b16 %v142
    %v659 = vunpack.c.l.b16 %v143
    %v660 = vunpack.c.l.b16 %v144
    %v661 = vunpack.c.l.b16 %v145
    %v662 = vunpack.c.l.b16 %v146
    %v663 = vunpack.c.l.b16 %v147
    %v664 = vunpack.c.l.b16 %v148
    %v665 = vunpack.c.l.b16 %v149
    %v666 = vunpack.c.l.b16 %v150
    %v667 = vunpack.c.l.b16 %v151
    %v668 = vunpack.c.l.b16 %v152
    %v669 = vunpack.c.l.b16 %v153
    %v670 = vunpack.c.l.b16 %v154
    %v671 = vunpack.c.l.b16 %v155
    %v672 = vunpack.c.l.b16 %v156
    %v673 = vunpack.c.l.b16 %v157
    %v674 = vunpack.c.l.b16 %v158
    %v675 = vunpack.c.l.b16 %v159
    %v676 = vunpack.c.l.b16 %v160
    %v677 = vunpack.c.l.b16 %v161
    %v678 = vunpack.c.l.b16 %v162
    %v679 = vunpack.c.l.b16 %v163
    %v680 = vunpack.c.l.b16 %v164
    %v681 = vunpack.c.l.b16 %v165
    %v682 = vunpack.c.l.b16 %v166
    %v683 = vunpack.c.l.b16 %v167
    %v684 = vunpack.c.l.b16 %v168
    %v685 = vunpack.c.l.b16 %v169
    %v686 = vunpack.c.l.b16 %v170
    %v687 = vunpack.c.l.b16 %v171
    %v688 = vunpack.c.l.b16 %v172
    %v689 = vunpack.c.l.b16 %v173
    %v690 = vunpack.c.l.b16 %v174
    %v691 = vunpack.c.l.b16 %v175
    %v692 = vunpack.c.l.b16 %v176
    %v693 = vunpack.c.l.b16 %v177
    %v694 = vunpack.c.l.b16 %v178
    %v695 = vunpack.c.l.b16 %v179
    %v696 = vunpack.c.l.b16 %v180
    %v697 = vunpack.c.l.b16 %v181
    %v698 = vunpack.c.l.b16 %v182
    %v699 = vunpack.c.l.b16 %v183
    %v700 = vunpack.c.l.b16 %v184
    %v701 = vunpack.c.l.b16 %v185
    %v702 = vunpack.c.l.b16 %v186
    %v703 = vunpack.c.l.b16 %v187
    %v704 = vunpack.c.l.b16 %v188
    %v705 = vunpack.c.l.b16 %v189
    %v706 = vunpack.c.l.b16 %v190
    %v707 = vunpack.c.l.b16 %v191
    %v708 = vunpack.c.l.b16 %v192
    %v709 = vunpack.c.l.b16 %v193
    %v710 = vunpack.c.l.b16 %v194
    %v711 = vunpack.c.l.b16 %v195
    %v712 = vunpack.c.l.b16 %v196
    %v713 = vunpack.c.l.b16 %v197
    %v714 = vunpack.c.l.b16 %v198
    %v715 = vunpack.c.l.b16 %v199
    %v716 = vunpack.c.l.b16 %v200
    %v717 = vunpack.c.l.b16 %v201
    %v718 = vunpack.c.l.b16 %v202
    %v719 = vunpack.c.l.b16 %v203
    %v720 = vunpack.c.l.b16 %v204
    %v721 = vunpack.c.l.b16 %v205
    %v722 = vunpack.c.l.b16 %v206
    %v723 = vunpack.c.l.b16 %v207
    %v724 = vunpack.c.l.b16 %v208
    %v725 = vunpack.c.l.b16 %v209
    %v726 = vunpack.c.l.b16 %v210
    %v727 = vunpack.c.l.b16 %v211
    %v728 = vunpack.c.l.b16 %v212
    %v729 = vunpack.c.l.b16 %v213
    %v730 = vunpack.c.l.b16 %v214
    %v731 = vunpack.c.l.b16 %v215
    %v732 = vunpack.c.l.b16 %v216
    %v733 = vunpack.c.l.b16 %v217
    %v734 = vunpack.c.l.b16 %v218
    %v735 = vunpack.c.l.b16 %v219
    %v736 = vunpack.c.l.b16 %v220
    %v737 = vunpack.c.l.b16 %v221
    %v738 = vunpack.c.l.b16 %v222
    %v739 = vunpack.c.l.b16 %v223
    %v740 = vunpack.c.l.b16 %v224
    %v741 = vunpack.c.l.b16 %v225
    %v742 = vunpack.c.l.b16 %v226
    %v743 = vunpack.c.l.b16 %v227
    %v744 = vunpack.c.l.b16 %v228
    %v745 = vunpack.c.l.b16 %v229
    %v746 = vunpack.c.l.b16 %v230
    %v747 = vunpack.c.l.b16 %v231
    %v748 = vunpack.c.l.b16 %v232
    %v749 = vunpack.c.l.b16 %v233
    %v750 = vunpack.c.l.b16 %v234
    %v751 = vunpack.c.l.b16 %v235
    %v752 = vunpack.c.l.b16 %v236
    %v753 = vunpack.c.l.b16 %v237
    %v754 = vunpack.c.l.b16 %v238
    %v755 = vunpack.c.l.b16 %v239
    %v756 = vunpack.c.l.b16 %v240
    %v757 = vunpack.c.l.b16 %v241
    %v758 = vunpack.c.l.b16 %v242
    %v759 = vunpack.c.l.b16 %v243
    %v760 = vunpack.c.l.b16 %v244
    %v761 = vunpack.c.l.b16 %v245
    %v762 = vunpack.c.l.b16 %v246
    %v763 = vunpack.c.l.b16 %v247
    %v764 = vunpack.c.l.b16 %v248
    %v765 = vunpack.c.l.b16 %v249
    %v766 = vunpack.c.l.b16 %v250
    %v767 = vunpack.c.l.b16 %v251
    %v768 = vunpack.c.l.b16 %v252
    %v769 = vunpack.c.l.b16 %v253
    %v770 = vunpack.c.l.b16 %v254
    %v771 = vunpack.c.l.b16 %v255
    %v772 = vunpack.c.l.b16 %v256
    %v773 = vunpack.c.l.b16 %v257
    %v774 = vunpack.c.l.b16 %v258
    %v775 = vunpack.c.l.b16 %v259
    %v776 = vunpack.c.l.b16 %v260
    %v777 = vunpack.c.l.b16 %v261
    %v778 = vunpack.c.l.b16 %v262
    %v779 = vunpack.c.l.b16 %v263
    %v780 = vunpack.c.l.b16 %v264
    %v781 = vunpack.c.l.b16 %v265
    %v782 = vunpack.c.l.b16 %v266
    %v783 = vunpack.c.l.b16 %v267
    %v784 = vunpack.c.l.b16 %v268
    %v785 = vunpack.c.l.b16 %v269
    %v786 = vunpack.c.l.b16 %v270
    %v787 = vunpack.c.l.b16 %v271
    %v788 = vunpack.c.l.b16 %v272
    %v789 = vunpack.c.l.b16 %v273
    %v790 = vunpack.c.l.b16 %v274
    %v791 = vunpack.c.l.b16 %v275
    %v792 = vunpack.c.l.b16 %v276
    %v793 = vunpack.c.l.b16 %v277
    %v794 = vunpack.c.l.b16 %v278
    %v795 = vunpack.c.l.b16 %v279
    %v796 = vunpack.c.l.b16 %v280
    %v797 = vunpack.c.l.b16 %v281
    %v798 = vunpack.c.l.b16 %v282
    %v799 = vunpack.c.l.b16 %v283
    %v800 = vunpack.c.l.b16 %v284
    %v801 = vunpack.c.l.b16 %v285
    %v802 = vunpack.c.l.b16 %v286
    %v803 = vunpack.c.l.b16 %v287
    %v804 = vunpack.c.l.b16 %v288
    %v805 = vunpack.c.l.b16 %v289
    %v806 = vunpack.c.l.b16 %v290
    %v807 = vunpack.c.l.b16 %v291
    %v808 = vunpack.c.l.b16 %v292
    %v809 = vunpack.c.l.b16 %v293
    %v810 = vunpack.c.l.b16 %v294
    %v811 = vunpack.c.l.b16 %v295
    %v812 = vunpack.c.l.b16 %v296
    %v813 = vunpack.c.l.b16 %v297
    %v814 = vunpack.c.l.b16 %v298
    %v815 = vunpack.c.l.b16 %v299
    %v816 = vunpack.c.l.b16 %v300
    %v817 = vunpack.c.l.b16 %v301
    %v818 = vunpack.c.l.b16 %v302
    %v819 = vunpack.c.l.b16 %v303
    %v820 = vunpack.c.l.b16 %v304
    %v821 = vunpack.c.l.b16 %v305
    %v822 = vunpack.c.l.b16 %v306
    %v823 = vunpack.c.l.b16 %v307
    %v824 = vunpack.c.l.b16 %v308
    %v825 = vunpack.c.l.b16 %v309
    %v826 = vunpack.c.l.b16 %v310
    %v827 = vunpack.c.l.b16 %v311
    %v828 = vunpack.c.l.b16 %v312
    %v829 = vunpack.c.l.b16 %v313
    %v830 = vunpack.c.l.b16 %v314
    %v831 = vunpack.c.l.b16 %v315
    %v832 = vunpack.c.l.b16 %v316
    %v833 = vunpack.c.l.b16 %v317
    %v834 = vunpack.c.l.b16 %v318
    %v835 = vunpack.c.l.b16 %v319
    %v836 = vunpack.c.l.b16 %v320
    %v837 = vunpack.c.l.b16 %v321
    %v838 = vunpack.c.l.b16 %v322
    %v839 = vunpack.c.l.b16 %v323
    %v840 = vunpack.c.l.b16 %v324
    %v841 = vunpack.c.l.b16 %v325
    %v842 = vunpack.c.l.b16 %v326
    %v843 = vunpack.c.l.b16 %v327
    %v844 = vunpack.c.l.b16 %v328
    %v845 = vunpack.c.l.b16 %v329
    %v846 = vunpack.c.l.b16 %v330
    %v847 = vunpack.c.l.b16 %v331
    %v848 = vunpack.c.l.b16 %v332
    %v849 = vunpack.c.l.b16 %v333
    %v850 = vunpack.c.l.b16 %v334
    %v851 = vunpack.c.l.b16 %v335
    %v852 = vunpack.c.l.b16 %v336
    %v853 = vunpack.c.l.b16 %v337
    %v854 = vunpack.c.l.b16 %v338
    %v855 = vunpack.c.l.b16 %v339
    %v856 = vunpack.c.l.b16 %v340
    %v857 = vunpack.c.l.b16 %v341
    %v858 = vunpack.c.l.b16 %v342
    %v859 = vunpack.c.l.b16 %v343
    %v860 = vunpack.c.l.b16 %v344
    %v861 = vunpack.c.l.b16 %v345
    %v862 = vunpack.c.l.b16 %v346
    %v863 = vunpack.c.l.b16 %v347
    %v864 = vunpack.c.l.b16 %v348
    %v865 = vunpack.c.l.b16 %v349
    %v866 = vunpack.c.l.b16 %v350
    %v867 = vunpack.c.l.b16 %v351
    %v868 = vunpack.c.l.b16 %v352
    %v869 = vunpack.c.l.b16 %v353
    %v870 = vunpack.c.l.b16 %v354
    %v871 = vunpack.c.l.b16 %v355
    %v872 = vunpack.c.l.b16 %v356
    %v873 = vunpack.c.l.b16 %v357
    %v874 = vunpack.c.l.b16 %v358
    %v875 = vunpack.c.l.b16 %v359
    %v876 = vunpack.c.l.b16 %v360
    %v877 = vunpack.c.l.b16 %v361
    %v878 = vunpack.c.l.b16 %v362
    %v879 = vunpack.c.l.b16 %v363
    %v880 = vunpack.c.l.b16 %v364
    %v881 = vunpack.c.l.b16 %v365
    %v882 = vunpack.c.l.b16 %v366
    %v883 = vunpack.c.l.b16 %v367
    %v884 = vunpack.c.l.b16 %v368
    %v885 = vunpack.c.l.b16 %v369
    %v886 = vunpack.c.l.b16 %v370
    %v887 = vunpack.c.l.b16 %v371
    %v888 = vunpack.c.l.b16 %v372
    %v889 = vunpack.c.l.b16 %v373
    %v890 = vpack.c.b16 %v635, %v634
    %v891 = vpack.c.b16 %v637, %v636
    %v892 = vpack.c.b16 %v639, %v638
    %v893 = vpack.c.b16 %v641, %v640
    %v894 = vpack.c.b16 %v643, %v642
    %v895 = vpack.c.b16 %v645, %v644
    %v896 = vpack.c.b16 %v647, %v646
    %v897 = vpack.c.b16 %v649, %v648
    %v898 = vpack.c.b16 %v651, %v650
    %v899 = vpack.c.b16 %v653, %v652
    %v900 = vpack.c.b16 %v655, %v654
    %v901 = vpack.c.b16 %v657, %v656
    %v902 = vpack.c.b16 %v659, %v658
    %v903 = vpack.c.b16 %v661, %v660
    %v904 = vpack.c.b16 %v663, %v662
    %v905 = vpack.c.b16 %v665, %v664
    %v906 = vpack.c.b16 %v667, %v666
    %v907 = vpack.c.b16 %v669, %v668
    %v908 = vpack.c.b16 %v671, %v670
    %v909 = vpack.c.b16 %v673, %v672
    %v910 = vpack.c.b16 %v675, %v674
    %v911 = vpack.c.b16 %v677, %v676
    %v912 = vpack.c.b16 %v679, %v678
    %v913 = vpack.c.b16 %v681, %v680
    %v914 = vpack.c.b16 %v683, %v682
    %v915 = vpack.c.b16 %v685, %v684
    %v916 = vpack.c.b16 %v687, %v686
    %v917 = vpack.c.b16 %v689, %v688
    %v918 = vpack.c.b16 %v691, %v690
    %v919 = vpack.c.b16 %v693, %v692
    %v920 = vpack.c.b16 %v695, %v694
    %v921 = vpack.c.b16 %v697, %v696
    %v922 = vpack.c.b16 %v699, %v698
    %v923 = vpack.c.b16 %v701, %v700
    %v924 = vpack.c.b16 %v703, %v702
    %v925 = vpack.c.b16 %v705, %v704
    %v926 = vpack.c.b16 %v707, %v706
    %v927 = vpack.c.b16 %v709, %v708
    %v928 = vpack.c.b16 %v711, %v710
    %v929 = vpack.c.b16 %v713, %v712
    %v930 = vpack.c.b16 %v715, %v714
    %v931 = vpack.c.b16 %v717, %v716
    %v932 = vpack.c.b16 %v719, %v718
    %v933 = vpack.c.b16 %v721, %v720
    %v934 = vpack.c.b16 %v723, %v722
    %v935 = vpack.c.b16 %v725, %v724
    %v936 = vpack.c.b16 %v727, %v726
    %v937 = vpack.c.b16 %v729, %v728
    %v938 = vpack.c.b16 %v731, %v730
    %v939 = vpack.c.b16 %v733, %v732
    %v940 = vpack.c.b16 %v735, %v734
    %v941 = vpack.c.b16 %v737, %v736
    %v942 = vpack.c.b16 %v739, %v738
    %v943 = vpack.c.b16 %v741, %v740
    %v944 = vpack.c.b16 %v743, %v742
    %v945 = vpack.c.b16 %v745, %v744
    %v946 = vpack.c.b16 %v747, %v746
    %v947 = vpack.c.b16 %v749, %v748
    %v948 = vpack.c.b16 %v751, %v750
    %v949 = vpack.c.b16 %v753, %v752
    %v950 = vpack.c.b16 %v755, %v754
    %v951 = vpack.c.b16 %v757, %v756
    %v952 = vpack.c.b16 %v759, %v758
    %v953 = vpack.c.b16 %v761, %v760
    %v954 = vpack.c.b16 %v763, %v762
    %v955 = vpack.c.b16 %v765, %v764
    %v956 = vpack.c.b16 %v767, %v766
    %v957 = vpack.c.b16 %v769, %v768
    %v958 = vpack.c.b16 %v771, %v770
    %v959 = vpack.c.b16 %v773, %v772
    %v960 = vpack.c.b16 %v775, %v774
    %v961 = vpack.c.b16 %v777, %v776
    %v962 = vpack.c.b16 %v779, %v778
    %v963 = vpack.c.b16 %v781, %v780
    %v964 = vpack.c.b16 %v783, %v782
    %v965 = vpack.c.b16 %v785, %v784
    %v966 = vpack.c.b16 %v787, %v786
    %v967 = vpack.c.b16 %v789, %v788
    %v968 = vpack.c.b16 %v791, %v790
    %v969 = vpack.c.b16 %v793, %v792
    %v970 = vpack.c.b16 %v795, %v794
    %v971 = vpack.c.b16 %v797, %v796
    %v972 = vpack.c.b16 %v799, %v798
    %v973 = vpack.c.b16 %v801, %v800
    %v974 = vpack.c.b16 %v803, %v802
    %v975 = vpack.c.b16 %v805, %v804
    %v976 = vpack.c.b16 %v807, %v806
    %v977 = vpack.c.b16 %v809, %v808
    %v978 = vpack.c.b16 %v811, %v810
    %v979 = vpack.c.b16 %v813, %v812
    %v980 = vpack.c.b16 %v815, %v814
    %v981 = vpack.c.b16 %v817, %v816
    %v982 = vpack.c.b16 %v819, %v818
    %v983 = vpack.c.b16 %v821, %v820
    %v984 = vpack.c.b16 %v823, %v822
    %v985 = vpack.c.b16 %v825, %v824
    %v986 = vpack.c.b16 %v827, %v826
    %v987 = vpack.c.b16 %v829, %v828
    %v988 = vpack.c.b16 %v831, %v830
    %v989 = vpack.c.b16 %v833, %v832
    %v990 = vpack.c.b16 %v835, %v834
    %v991 = vpack.c.b16 %v837, %v836
    %v992 = vpack.c.b16 %v839, %v838
    %v993 = vpack.c.b16 %v841, %v840
    %v994 = vpack.c.b16 %v843, %v842
    %v995 = vpack.c.b16 %v845, %v844
    %v996 = vpack.c.b16 %v847, %v846
    %v997 = vpack.c.b16 %v849, %v848
    %v998 = vpack.c.b16 %v851, %v850
    %v999 = vpack.c.b16 %v853, %v852
    %v1000 = vpack.c.b16 %v855, %v854
    %v1001 = vpack.c.b16 %v857, %v856
    %v1002 = vpack.c.b16 %v859, %v858
    %v1003 = vpack.c.b16 %v861, %v860
    %v1004 = vpack.c.b16 %v863, %v862
    %v1005 = vpack.c.b16 %v865, %v864
    %v1006 = vpack.c.b16 %v867, %v866
    %v1007 = vpack.c.b16 %v869, %v868
    %v1008 = vpack.c.b16 %v871, %v870
    %v1009 = vpack.c.b16 %v873, %v872
    %v1010 = vpack.c.b16 %v875, %v874
    %v1011 = vpack.c.b16 %v877, %v876
    %v1012 = vpack.c.b16 %v879, %v878
    %v1013 = vpack.c.b16 %v881, %v880
    %v1014 = vpack.c.b16 %v883, %v882
    %v1015 = vpack.c.b16 %v885, %v884
    %v1016 = vpack.c.b16 %v887, %v886
    %v1017 = vpack.c.b16 %v889, %v888
    %1146 = vmatpush.bf16.msra.mxu0 %v897
    %1147 = vmatpush.bf16.msra.mxu0 %v896
    %1148 = vmatpush.bf16.msra.mxu0 %v895
    %1149 = vmatpush.bf16.msra.mxu0 %v894
    %1150 = vmatpush.bf16.msra.mxu0 %v893
    %1151 = vmatpush.bf16.msra.mxu0 %v892
    %1152 = vmatpush.bf16.msra.mxu0 %v891
    %1153 = vmatpush.bf16.msra.mxu0 %v890
    %1154 = vmatmul.bf16.gmra.mxu0 %v102
    %v1155 = vpop.f32.mrf.mxu0
    %v1156 = vadd.f32 %v376, %v1155
    %v1157 = vpop.f32.mrf.mxu0
    %1158 = vdwg.mxu0
    %1159 = vmatpush.bf16.msra.mxu0 %v905
    %1160 = vmatpush.bf16.msra.mxu0 %v904
    %1161 = vmatpush.bf16.msra.mxu0 %v903
    %1162 = vmatpush.bf16.msra.mxu0 %v902
    %1163 = vmatpush.bf16.msra.mxu0 %v901
    %1164 = vmatpush.bf16.msra.mxu0 %v900
    %1165 = vmatpush.bf16.msra.mxu0 %v899
    %1166 = vmatpush.bf16.msra.mxu0 %v898
    %1167 = vmatmul.bf16.gmra.mxu0 %v103
    %v1168 = vpop.f32.mrf.mxu0
    %v1169 = vadd.f32 %v1156, %v1168
    %v1170 = vpop.f32.mrf.mxu0
    %1171 = vdwg.mxu0
    %1172 = vmatpush.bf16.msra.mxu0 %v913
    %1173 = vmatpush.bf16.msra.mxu0 %v912
    %1174 = vmatpush.bf16.msra.mxu0 %v911
    %1175 = vmatpush.bf16.msra.mxu0 %v910
    %1176 = vmatpush.bf16.msra.mxu0 %v909
    %1177 = vmatpush.bf16.msra.mxu0 %v908
    %1178 = vmatpush.bf16.msra.mxu0 %v907
    %1179 = vmatpush.bf16.msra.mxu0 %v906
    %1180 = vmatmul.bf16.gmra.mxu0 %v104
    %v1181 = vpop.f32.mrf.mxu0
    %v1182 = vadd.f32 %v1169, %v1181
    %v1183 = vpop.f32.mrf.mxu0
    %1184 = vdwg.mxu0
    %1185 = vmatpush.bf16.msra.mxu0 %v921
    %1186 = vmatpush.bf16.msra.mxu0 %v920
    %1187 = vmatpush.bf16.msra.mxu0 %v919
    %1188 = vmatpush.bf16.msra.mxu0 %v918
    %1189 = vmatpush.bf16.msra.mxu0 %v917
    %1190 = vmatpush.bf16.msra.mxu0 %v916
    %1191 = vmatpush.bf16.msra.mxu0 %v915
    %1192 = vmatpush.bf16.msra.mxu0 %v914
    %1193 = vmatmul.bf16.gmra.mxu0 %v105
    %v1194 = vpop.f32.mrf.mxu0
    %v1195 = vadd.f32 %v1182, %v1194
    %v1196 = vpop.f32.mrf.mxu0
    %1197 = vdwg.mxu0
    %1198 = vmatpush.bf16.msra.mxu0 %v929
    %1199 = vmatpush.bf16.msra.mxu0 %v928
    %1200 = vmatpush.bf16.msra.mxu0 %v927
    %1201 = vmatpush.bf16.msra.mxu0 %v926
    %1202 = vmatpush.bf16.msra.mxu0 %v925
    %1203 = vmatpush.bf16.msra.mxu0 %v924
    %1204 = vmatpush.bf16.msra.mxu0 %v923
    %1205 = vmatpush.bf16.msra.mxu0 %v922
    %1206 = vmatmul.bf16.gmra.mxu0 %v106
    %v1207 = vpop.f32.mrf.mxu0
    %v1208 = vadd.f32 %v1195, %v1207
    %v1209 = vpop.f32.mrf.mxu0
    %1210 = vdwg.mxu0
    %1211 = vmatpush.bf16.msra.mxu0 %v937
    %1212 = vmatpush.bf16.msra.mxu0 %v936
    %1213 = vmatpush.bf16.msra.mxu0 %v935
    %1214 = vmatpush.bf16.msra.mxu0 %v934
    %1215 = vmatpush.bf16.msra.mxu0 %v933
    %1216 = vmatpush.bf16.msra.mxu0 %v932
    %1217 = vmatpush.bf16.msra.mxu0 %v931
    %1218 = vmatpush.bf16.msra.mxu0 %v930
    %1219 = vmatmul.bf16.gmra.mxu0 %v107
    %v1220 = vpop.f32.mrf.mxu0
    %v1221 = vadd.f32 %v1208, %v1220
    %v1222 = vpop.f32.mrf.mxu0
    %1223 = vdwg.mxu0
    %1224 = vmatpush.bf16.msra.mxu0 %v945
    %1225 = vmatpush.bf16.msra.mxu0 %v944
    %1226 = vmatpush.bf16.msra.mxu0 %v943
    %1227 = vmatpush.bf16.msra.mxu0 %v942
    %1228 = vmatpush.bf16.msra.mxu0 %v941
    %1229 = vmatpush.bf16.msra.mxu0 %v940
    %1230 = vmatpush.bf16.msra.mxu0 %v939
    %1231 = vmatpush.bf16.msra.mxu0 %v938
    %1232 = vmatmul.bf16.gmra.mxu0 %v108
    %v1233 = vpop.f32.mrf.mxu0
    %v1234 = vadd.f32 %v1221, %v1233
    %v1235 = vpop.f32.mrf.mxu0
    %1236 = vdwg.mxu0
    %1237 = vmatpush.bf16.msra.mxu0 %v953
    %1238 = vmatpush.bf16.msra.mxu0 %v952
    %1239 = vmatpush.bf16.msra.mxu0 %v951
    %1240 = vmatpush.bf16.msra.mxu0 %v950
    %1241 = vmatpush.bf16.msra.mxu0 %v949
    %1242 = vmatpush.bf16.msra.mxu0 %v948
    %1243 = vmatpush.bf16.msra.mxu0 %v947
    %1244 = vmatpush.bf16.msra.mxu0 %v946
    %1245 = vmatmul.bf16.gmra.mxu0 %v109
    %v1246 = vpop.f32.mrf.mxu0
    %v1247 = vadd.f32 %v1234, %v1246
    %v1248 = vpop.f32.mrf.mxu0
    %1249 = vdwg.mxu0
    %1250 = vmatpush.bf16.msra.mxu0 %v961
    %1251 = vmatpush.bf16.msra.mxu0 %v960
    %1252 = vmatpush.bf16.msra.mxu0 %v959
    %1253 = vmatpush.bf16.msra.mxu0 %v958
    %1254 = vmatpush.bf16.msra.mxu0 %v957
    %1255 = vmatpush.bf16.msra.mxu0 %v956
    %1256 = vmatpush.bf16.msra.mxu0 %v955
    %1257 = vmatpush.bf16.msra.mxu0 %v954
    %1258 = vmatmul.bf16.gmra.mxu0 %v110
    %v1259 = vpop.f32.mrf.mxu0
    %v1260 = vadd.f32 %v1247, %v1259
    %v1261 = vpop.f32.mrf.mxu0
    %1262 = vdwg.mxu0
    %1263 = vmatpush.bf16.msra.mxu0 %v969
    %1264 = vmatpush.bf16.msra.mxu0 %v968
    %1265 = vmatpush.bf16.msra.mxu0 %v967
    %1266 = vmatpush.bf16.msra.mxu0 %v966
    %1267 = vmatpush.bf16.msra.mxu0 %v965
    %1268 = vmatpush.bf16.msra.mxu0 %v964
    %1269 = vmatpush.bf16.msra.mxu0 %v963
    %1270 = vmatpush.bf16.msra.mxu0 %v962
    %1271 = vmatmul.bf16.gmra.mxu0 %v111
    %v1272 = vpop.f32.mrf.mxu0
    %v1273 = vadd.f32 %v1260, %v1272
    %v1274 = vpop.f32.mrf.mxu0
    %1275 = vdwg.mxu0
    %1276 = vmatpush.bf16.msra.mxu0 %v977
    %1277 = vmatpush.bf16.msra.mxu0 %v976
    %1278 = vmatpush.bf16.msra.mxu0 %v975
    %1279 = vmatpush.bf16.msra.mxu0 %v974
    %1280 = vmatpush.bf16.msra.mxu0 %v973
    %1281 = vmatpush.bf16.msra.mxu0 %v972
    %1282 = vmatpush.bf16.msra.mxu0 %v971
    %1283 = vmatpush.bf16.msra.mxu0 %v970
    %1284 = vmatmul.bf16.gmra.mxu0 %v112
    %v1285 = vpop.f32.mrf.mxu0
    %v1286 = vadd.f32 %v1273, %v1285
    %v1287 = vpop.f32.mrf.mxu0
    %1288 = vdwg.mxu0
    %1289 = vmatpush.bf16.msra.mxu0 %v985
    %1290 = vmatpush.bf16.msra.mxu0 %v984
    %1291 = vmatpush.bf16.msra.mxu0 %v983
    %1292 = vmatpush.bf16.msra.mxu0 %v982
    %1293 = vmatpush.bf16.msra.mxu0 %v981
    %1294 = vmatpush.bf16.msra.mxu0 %v980
    %1295 = vmatpush.bf16.msra.mxu0 %v979
    %1296 = vmatpush.bf16.msra.mxu0 %v978
    %1297 = vmatmul.bf16.gmra.mxu0 %v113
    %v1298 = vpop.f32.mrf.mxu0
    %v1299 = vadd.f32 %v1286, %v1298
    %v1300 = vpop.f32.mrf.mxu0
    %1301 = vdwg.mxu0
    %1302 = vmatpush.bf16.msra.mxu0 %v993
    %1303 = vmatpush.bf16.msra.mxu0 %v992
    %1304 = vmatpush.bf16.msra.mxu0 %v991
    %1305 = vmatpush.bf16.msra.mxu0 %v990
    %1306 = vmatpush.bf16.msra.mxu0 %v989
    %1307 = vmatpush.bf16.msra.mxu0 %v988
    %1308 = vmatpush.bf16.msra.mxu0 %v987
    %1309 = vmatpush.bf16.msra.mxu0 %v986
    %1310 = vmatmul.bf16.gmra.mxu0 %v114
    %v1311 = vpop.f32.mrf.mxu0
    %v1312 = vadd.f32 %v1299, %v1311
    %v1313 = vpop.f32.mrf.mxu0
    %1314 = vdwg.mxu0
    %1315 = vmatpush.bf16.msra.mxu0 %v1001
    %1316 = vmatpush.bf16.msra.mxu0 %v1000
    %1317 = vmatpush.bf16.msra.mxu0 %v999
    %1318 = vmatpush.bf16.msra.mxu0 %v998
    %1319 = vmatpush.bf16.msra.mxu0 %v997
    %1320 = vmatpush.bf16.msra.mxu0 %v996
    %1321 = vmatpush.bf16.msra.mxu0 %v995
    %1322 = vmatpush.bf16.msra.mxu0 %v994
    %1323 = vmatmul.bf16.gmra.mxu0 %v115
    %v1324 = vpop.f32.mrf.mxu0
    %v1325 = vadd.f32 %v1312, %v1324
    %v1326 = vpop.f32.mrf.mxu0
    %1327 = vdwg.mxu0
    %1328 = vmatpush.bf16.msra.mxu0 %v1009
    %1329 = vmatpush.bf16.msra.mxu0 %v1008
    %1330 = vmatpush.bf16.msra.mxu0 %v1007
    %1331 = vmatpush.bf16.msra.mxu0 %v1006
    %1332 = vmatpush.bf16.msra.mxu0 %v1005
    %1333 = vmatpush.bf16.msra.mxu0 %v1004
    %1334 = vmatpush.bf16.msra.mxu0 %v1003
    %1335 = vmatpush.bf16.msra.mxu0 %v1002
    %1336 = vmatmul.bf16.gmra.mxu0 %v116
    %v1337 = vpop.f32.mrf.mxu0
    %v1338 = vadd.f32 %v1325, %v1337
    %v1339 = vpop.f32.mrf.mxu0
    %1340 = vdwg.mxu0
    %1341 = vmatpush.bf16.msra.mxu0 %v1017
    %1342 = vmatpush.bf16.msra.mxu0 %v1016
    %1343 = vmatpush.bf16.msra.mxu0 %v1015
    %1344 = vmatpush.bf16.msra.mxu0 %v1014
    %1345 = vmatpush.bf16.msra.mxu0 %v1013
    %1346 = vmatpush.bf16.msra.mxu0 %v1012
    %1347 = vmatpush.bf16.msra.mxu0 %v1011
    %1348 = vmatpush.bf16.msra.mxu0 %v1010
    %1349 = vmatmul.bf16.gmra.mxu0 %v117
    %v1350 = vpop.f32.mrf.mxu0
    %v1351 = vadd.f32 %v1338, %v1350
    %v1352 = vpop.f32.mrf.mxu0
    %1353 = vdwg.mxu0
    %vm1354 = vcmask 15360
    %1355 = vst.msk [vmem:[#allocation2] sm:$0xff] %vm1354, %v1351
    // Predicated region
    $region14: #{predictor_forward.1} parent=1 // pred_check
      _
    $region15: #{predictor_forward.1} parent=1 // pred_check_branch
      %1357 = sbr.rel (0) target = $region17
    $region16: #{predictor_forward.1} parent=1 // pred_region
      %1359 = vsyncadd [#allocation3], 96
      %s1360 = sshll.u32 [#allocation2], 4
      %s1361 = int_to_ptr.vmem [resolvable:$true] %s1360
      %s1362 = sshll.u32 %s3, 4
      %s1363 = int_to_ptr.hbm [resolvable:$true] %s1362
      %1368 = dma.vmem_to_hbm [thread:$0]  %s1361, 32, %s1363, [#allocation3], 32, 32, 2
    $region17: #{predictor_forward.1} parent=1 // pred_fallthru
      _
    // Predicated region
    $region18: #{predictor_forward.1} parent=1 // pred_check
      _
    $region19: #{predictor_forward.1} parent=1 // pred_check_branch
      %1370 = sbr.rel (0) target = $region21
    $region20: #{predictor_forward.1} parent=1 // pred_region
      %1372 = dma.done [#allocation3], 128
    $region21: #{predictor_forward.1} parent=1 // pred_fallthru
      _
    %1373 = vsyncpa [#allocation3], 1

</llo_original>
